<compile_context>
chip_gen: v7x
topology: tpu7x:2x2x1
jax: 0.10.0
libtpu: 0.0.40
codegen_flags: <defaults>
</compile_context>

<pallas_src>
import functools
import math

import jax
import jax.numpy as jnp
from jax.experimental import pallas as pl
from jax.experimental.pallas import tpu as pltpu

# --------------------------------------------------------------------------
# Model hyper-parameters (defaults of AddFeaturesEmbeddingNet)
# --------------------------------------------------------------------------
N_FACTORS = 50          # user / product embedding width
N_FACTORS_FIX = 30      # side-feature embedding width
HIDDEN = 10             # hidden = 10 (single hidden layer)
FEAT_DIM = N_FACTORS * 2 + N_FACTORS_FIX * 5   # 250
FEAT_PAD = 256          # padded contraction dim used only during host-side folding
MINMAX = (1.0, 5.0)     # rating min / max (like the csv-derived minmax)

# vocab sizes (small synthetic)
N_USERS, N_PRODUCTS, N_PRICES = 20, 15, 6
N_SKINTYPES, N_SKINTONES, N_CONCERNS, N_BRANDS = 5, 7, 9, 12

EMB_SPECS = (
    ("user_emb",     N_USERS,     N_FACTORS),
    ("product_emb",  N_PRODUCTS,  N_FACTORS),
    ("price_emb",    N_PRICES,    N_FACTORS_FIX),
    ("skintype_emb", N_SKINTYPES, N_FACTORS_FIX),
    ("skintone_emb", N_SKINTONES, N_FACTORS_FIX),
    ("concern_emb",  N_CONCERNS,  N_FACTORS_FIX),
    ("brand_emb",    N_BRANDS,    N_FACTORS_FIX),
)
VOCAB_OFFSETS = []
_off = 0
for _name, _n, _d in EMB_SPECS:
    VOCAB_OFFSETS.append(_off)
    _off += _n
VOCAB_TOTAL = _off                  # 74
BIAS_IDX = VOCAB_TOTAL              # constant "feature id" selecting the bias-one row
VOCAB_PAD = 128                     # vocab axis padded to one clean lane tile
N_IDX = len(EMB_SPECS) + 1          # 7 feature ids + 1 constant bias id = 8 (sublane tile)

BATCH = 8
MAX_BLOCK_B = 1024                  # batch-tile upper bound (lanes); VMEM is never tight


def _round_up(x, m):
    return ((x + m - 1) // m) * m


def _choose_block_b(batch, max_block_b=MAX_BLOCK_B):
    """Lane-aligned batch tile.  Large batches get >= 2 tiles (v7x megacore)."""
    b_min = _round_up(max(int(batch), 1), 128)
    if b_min <= 128:
        return 128                                   # single tiny tile
    return min(max_block_b, _round_up(pl.cdiv(b_min, 2), 128))


# --------------------------------------------------------------------------
# Pallas kernel: fused (gather+concat+Linear1) as one (10,128)x(128,tb) matmul
#   idx:(8, tb) i32   g:(HIDDEN, VOCAB_PAD)   w2:(HIDDEN, 1)   b2:(1,1) [SMEM]
#   -> o:(1, tb) f32
# --------------------------------------------------------------------------
def _make_fused_kernel(min_rating, max_rating, vocab_pad):
    scale = max_rating - min_rating + 1.0
    shift = min_rating - 0.5

    def kernel(idx_ref, g_ref, w2_ref, b2_ref, o_ref):
        idx = idx_ref[...]                                    # (8, tb) int32
        n_idx, tb = idx.shape

        # Multi-hot^T (vocab, batch) built as a boolean OR of 8 disjoint one-hots,
        # cast to the MXU dtype exactly once (VALU-friendly: 8 cmps + 1 cast).
        iota = jax.lax.broadcasted_iota(jnp.int32, (vocab_pad, tb), 0)
        hit = iota == idx[0:1, :]
        for j in range(1, n_idx):
            hit = jnp.logical_or(hit, iota == idx[j:j + 1, :])
        mh = hit.astype(g_ref.dtype)                          # 0/1 exact in f32 or bf16

        # Fused gather + concat + hidden layer in ONE tiny MXU pass:
        #   h^T[o, b] = sum_v G[o, v] * mh[v, b]   (b1 carried by the bias-one column)
        h = jnp.dot(g_ref[...], mh,
                    preferred_element_type=jnp.float32)       # (HIDDEN, tb) f32
        h = jnp.maximum(h, 0.0)                               # ReLU

        # 10 -> 1 projection on VPU (no degenerate MXU op); b2 scalar from SMEM.
        z = jnp.sum(h * w2_ref[...], axis=0, keepdims=True) + b2_ref[0, 0]  # (1, tb)
        y = pl.reciprocal(1.0 + jnp.exp(-z))                  # sigmoid; exp rides the EUP
        o_ref[...] = y * scale + shift                        # minmax rescale, lane-dense

    return kernel


def fused_mlp(idx, g, w2, b2, minmax, block_b):
    """idx:(8, B_pad) i32 (batch on lanes) -> (1, B_pad) f32 predictions."""
    n_idx, b_pad = idx.shape
    hidden, vocab_pad = g.shape
    num_tiles = b_pad // block_b
    lo, hi = minmax
    kernel = _make_fused_kernel(lo, hi, vocab_pad)
    return pl.pallas_call(
        kernel,
        out_shape=jax.ShapeDtypeStruct((1, b_pad), jnp.float32),
        grid_spec=pltpu.PrefetchScalarGridSpec(
            num_scalar_prefetch=0,
            grid=(num_tiles,),
            in_specs=[
                pl.BlockSpec((n_idx, block_b), lambda i: (0, i)),       # ids, lane-tiled
                pl.BlockSpec((hidden, vocab_pad), lambda i: (0, 0)),    # folded G (resident)
                pl.BlockSpec((hidden, 1), lambda i: (0, 0)),            # W2
                pl.BlockSpec(memory_space=pltpu.MemorySpace.SMEM),      # b2 scalar
            ],
            out_specs=pl.BlockSpec((1, block_b), lambda i: (0, i)),     # lane-dense out
        ),
        compiler_params=pltpu.CompilerParams(
            dimension_semantics=("parallel",)),   # v7x: batch tiles split across both TCs
    )(idx, g, w2, b2)


# --------------------------------------------------------------------------
# Host-side weight packing + W1 fold (do this ONCE per parameter update,
# outside the jitted forward).
# --------------------------------------------------------------------------
def build_fused_weights(params, mxu_dtype=jnp.float32):
    # Block-diagonal gather matrix: vocab row v holds its embedding row placed at that
    # feature group's column offset; row BIAS_IDX is the constant-one feature
    # (column FEAT_DIM) used to carry b1 through the fold.  Padded rows/cols stay zero.
    e_blk = jnp.zeros((VOCAB_PAD, FEAT_PAD), jnp.float32)
    row, col = 0, 0
    for name, n, d in EMB_SPECS:
        e_blk = e_blk.at[row:row + n, col:col + d].set(params[name])
        row += n
        col += d
    e_blk = e_blk.at[BIAS_IDX, FEAT_DIM].set(1.0)

    w1_t = jnp.zeros((HIDDEN, FEAT_PAD), jnp.float32)
    w1_t = w1_t.at[:, :FEAT_DIM].set(params["w1"].T)
    w1_t = w1_t.at[:, FEAT_DIM].set(params["b1"][0])          # fold b1 (pad rows are 0 -> exact)

    # Fold W1 into the gather matrix: G = W1^T @ E_blk^T  ->  (HIDDEN, VOCAB_PAD).
    # G[:, BIAS_IDX] == b1, so the constant bias id still injects b1 exactly.
    g = (w1_t @ e_blk.T).astype(mxu_dtype)
    # NOTE: mxu_dtype=jnp.bfloat16 halves MXU-operand traffic on v6e/v7x but adds
    # ~2^-8 relative error (would fail the 1e-4 allclose check below); default f32.

    return {
        "g":  g,                     # (HIDDEN, VOCAB_PAD) = (10, 128)
        "w2": params["w2"],          # (HIDDEN, 1)
        "b2": params["b2"],          # (1, 1) -> SMEM scalar
    }


# --------------------------------------------------------------------------
# Deterministic parameter initialization (mirrors module._init())
# --------------------------------------------------------------------------
def init_params(key):
    ks = jax.random.split(key, 9)

    def emb(k, n, d):
        return jax.random.uniform(k, (n, d), jnp.float32, -0.1, 0.1)

    def xavier(k, fan_in, fan_out):
        bound = math.sqrt(6.0 / (fan_in + fan_out))
        # stored as (in, out) so the math is x @ W
        return jax.random.uniform(k, (fan_in, fan_out), jnp.float32, -bound, bound)

    return {
        "user_emb":     emb(ks[0], N_USERS, N_FACTORS),
        "product_emb":  emb(ks[1], N_PRODUCTS, N_FACTORS),
        "price_emb":    emb(ks[2], N_PRICES, N_FACTORS_FIX),
        "skintype_emb": emb(ks[3], N_SKINTYPES, N_FACTORS_FIX),
        "skintone_emb": emb(ks[4], N_SKINTONES, N_FACTORS_FIX),
        "concern_emb":  emb(ks[5], N_CONCERNS, N_FACTORS_FIX),
        "brand_emb":    emb(ks[6], N_BRANDS, N_FACTORS_FIX),
        "w1": xavier(ks[7], FEAT_DIM, HIDDEN),
        "b1": jnp.full((1, HIDDEN), 0.01, jnp.float32),
        "w2": xavier(ks[8], HIDDEN, 1),
        "b2": jnp.full((1, 1), 0.01, jnp.float32),
    }


# --------------------------------------------------------------------------
# Jitted forward pass (eval mode: all dropouts are identity).
# `packed` = build_fused_weights(params) -- built once, outside the hot path.
# --------------------------------------------------------------------------
@functools.partial(jax.jit, static_argnames=("minmax", "max_block_b"))
def forward(packed, users, products, prices, skintypes, skintones, concerns,
            brands, minmax=MINMAX, max_block_b=MAX_BLOCK_B):
    B = users.shape[0]
    block_b = _choose_block_b(B, max_block_b)
    b_pad = _round_up(B, block_b)

    feats = (users, products, prices, skintypes, skintones, concerns, brands)
    rows = [f.astype(jnp.int32) + off for f, off in zip(feats, VOCAB_OFFSETS)]
    rows.append(jnp.full((B,), BIAS_IDX, jnp.int32))          # constant bias feature id
    idx = jnp.stack(rows, axis=0)                             # (8, B)
    idx = jnp.pad(idx, ((0, 0), (0, b_pad - B)))              # tail pad; results discarded

    # TODO(synk): dropout layers (embedding_dropout=0.02, hidden dropout=0.2) are
    # identity in eval mode, so they are intentionally not implemented.
    out = fused_mlp(idx, packed["g"], packed["w2"], packed["b2"],
                    minmax, block_b)                          # (1, b_pad)
    return out.reshape(-1)[:B][:, None]                       # (B, 1)


# --------------------------------------------------------------------------
# Pure-JAX reference for a sanity check
# --------------------------------------------------------------------------
def forward_ref(params, users, products, prices, skintypes, skintones,
                concerns, brands, minmax=MINMAX):
    feat = jnp.concatenate(
        [
            params["user_emb"][users],
            params["product_emb"][products],
            params["price_emb"][prices],
            params["skintype_emb"][skintypes],
            params["skintone_emb"][skintones],
            params["concern_emb"][concerns],
            params["brand_emb"][brands],
        ],
        axis=1,
    )
    h = jnp.maximum(feat @ params["w1"] + params["b1"], 0.0)
    y = jax.nn.sigmoid(h @ params["w2"] + params["b2"])
    lo, hi = minmax
    return y * (hi - lo + 1.0) + lo - 0.5


# --------------------------------------------------------------------------
if __name__ == "__main__":
    key = jax.random.PRNGKey(0)
    pkey, ikey = jax.random.split(key)
    params = init_params(pkey)
    packed = build_fused_weights(params)          # pack + W1-fold ONCE (off the hot path)

    ks = jax.random.split(ikey, 7)
    users     = jax.random.randint(ks[0], (BATCH,), 0, N_USERS,     jnp.int32)
    products  = jax.random.randint(ks[1], (BATCH,), 0, N_PRODUCTS,  jnp.int32)
    prices    = jax.random.randint(ks[2], (BATCH,), 0, N_PRICES,    jnp.int32)
    skintypes = jax.random.randint(ks[3], (BATCH,), 0, N_SKINTYPES, jnp.int32)
    skintones = jax.random.randint(ks[4], (BATCH,), 0, N_SKINTONES, jnp.int32)
    concerns  = jax.random.randint(ks[5], (BATCH,), 0, N_CONCERNS,  jnp.int32)
    brands    = jax.random.randint(ks[6], (BATCH,), 0, N_BRANDS,    jnp.int32)

    out = forward(packed, users, products, prices, skintypes, skintones,
                  concerns, brands, minmax=MINMAX)
    out = jax.block_until_ready(out)

    ref = forward_ref(params, users, products, prices, skintypes, skintones,
                      concerns, brands, MINMAX)
    assert out.shape == (BATCH, 1), out.shape
    assert jnp.allclose(out, ref, atol=1e-4, rtol=1e-4), (out, ref)

    print("KERNEL_OK")
</pallas_src>

<mosaic_0001>
module attributes {stable_mosaic.version = 11 : i64} {
  func.func @kernel(%arg0: i32, %arg1: memref<8x128xi32, #tpu.memory_space<vmem>>, %arg2: memref<10x128xf32, #tpu.memory_space<vmem>>, %arg3: memref<10x1xf32, #tpu.memory_space<vmem>>, %arg4: memref<1x1xf32, #tpu.memory_space<smem>>, %arg5: memref<1x128xf32, #tpu.memory_space<vmem>>) attributes {dimension_semantics = [#tpu.dimension_semantics<parallel>], iteration_bounds = array<i64: 1>, scalar_prefetch = 0 : i64, scratch_operands = 0 : i64, tpu.core_type = #tpu.core_type<tc>, window_params = [{transform_indices = @transform_0, window_bounds = array<i64: 8, 128>}, {pipeline_mode = #tpu.pipeline_mode<synchronous>, transform_indices = @transform_1, window_bounds = array<i64: 10, 128>}, {pipeline_mode = #tpu.pipeline_mode<synchronous>, transform_indices = @transform_2, window_bounds = array<i64: 10, 1>}, {transform_indices = @transform_3, window_bounds = array<i64: 1, 1>}, {transform_indices = @transform_4, window_bounds = array<i64: 1, 128>}]} {
    %c0 = arith.constant 0 : index
    %c0_0 = arith.constant 0 : index
    %0 = vector.load %arg1[%c0, %c0_0] : memref<8x128xi32, #tpu.memory_space<vmem>>, vector<8x128xi32>
    %1 = tpu.iota {dimensions = array<i32: 0>} : vector<128x128xi32>
    %2 = vector.extract_strided_slice %0 {offsets = [0, 0], sizes = [1, 128], strides = [1, 1]} : vector<8x128xi32> to vector<1x128xi32>
    %3 = vector.broadcast %2 : vector<1x128xi32> to vector<128x128xi32>
    %4 = arith.cmpi eq, %1, %3 : vector<128x128xi32>
    %5 = vector.extract_strided_slice %0 {offsets = [1, 0], sizes = [1, 128], strides = [1, 1]} : vector<8x128xi32> to vector<1x128xi32>
    %6 = vector.broadcast %5 : vector<1x128xi32> to vector<128x128xi32>
    %7 = arith.cmpi eq, %1, %6 : vector<128x128xi32>
    %8 = arith.ori %4, %7 : vector<128x128xi1>
    %9 = vector.extract_strided_slice %0 {offsets = [2, 0], sizes = [1, 128], strides = [1, 1]} : vector<8x128xi32> to vector<1x128xi32>
    %10 = vector.broadcast %9 : vector<1x128xi32> to vector<128x128xi32>
    %11 = arith.cmpi eq, %1, %10 : vector<128x128xi32>
    %12 = arith.ori %8, %11 : vector<128x128xi1>
    %13 = vector.extract_strided_slice %0 {offsets = [3, 0], sizes = [1, 128], strides = [1, 1]} : vector<8x128xi32> to vector<1x128xi32>
    %14 = vector.broadcast %13 : vector<1x128xi32> to vector<128x128xi32>
    %15 = arith.cmpi eq, %1, %14 : vector<128x128xi32>
    %16 = arith.ori %12, %15 : vector<128x128xi1>
    %17 = vector.extract_strided_slice %0 {offsets = [4, 0], sizes = [1, 128], strides = [1, 1]} : vector<8x128xi32> to vector<1x128xi32>
    %18 = vector.broadcast %17 : vector<1x128xi32> to vector<128x128xi32>
    %19 = arith.cmpi eq, %1, %18 : vector<128x128xi32>
    %20 = arith.ori %16, %19 : vector<128x128xi1>
    %21 = vector.extract_strided_slice %0 {offsets = [5, 0], sizes = [1, 128], strides = [1, 1]} : vector<8x128xi32> to vector<1x128xi32>
    %22 = vector.broadcast %21 : vector<1x128xi32> to vector<128x128xi32>
    %23 = arith.cmpi eq, %1, %22 : vector<128x128xi32>
    %24 = arith.ori %20, %23 : vector<128x128xi1>
    %25 = vector.extract_strided_slice %0 {offsets = [6, 0], sizes = [1, 128], strides = [1, 1]} : vector<8x128xi32> to vector<1x128xi32>
    %26 = vector.broadcast %25 : vector<1x128xi32> to vector<128x128xi32>
    %27 = arith.cmpi eq, %1, %26 : vector<128x128xi32>
    %28 = arith.ori %24, %27 : vector<128x128xi1>
    %29 = vector.extract_strided_slice %0 {offsets = [7, 0], sizes = [1, 128], strides = [1, 1]} : vector<8x128xi32> to vector<1x128xi32>
    %30 = vector.broadcast %29 : vector<1x128xi32> to vector<128x128xi32>
    %31 = arith.cmpi eq, %1, %30 : vector<128x128xi32>
    %32 = arith.ori %28, %31 : vector<128x128xi1>
    %33 = arith.extui %32 : vector<128x128xi1> to vector<128x128xi32>
    %34 = arith.sitofp %33 : vector<128x128xi32> to vector<128x128xf32>
    %c0_1 = arith.constant 0 : index
    %c0_2 = arith.constant 0 : index
    %35 = vector.load %arg2[%c0_1, %c0_2] : memref<10x128xf32, #tpu.memory_space<vmem>>, vector<10x128xf32>
    %cst = arith.constant dense<0.000000e+00> : vector<10x128xf32>
    %36 = tpu.matmul %35, %34, %cst {dimension_numbers = #tpu.dot_dimension_numbers<[1], [0], [0], [1], [0, 0, 1, 1], [], []>} : vector<10x128xf32>, vector<128x128xf32>, vector<10x128xf32> -> vector<10x128xf32>
    %cst_3 = arith.constant 0.000000e+00 : f32
    %37 = vector.broadcast %cst_3 : f32 to vector<10x128xf32>
    %38 = arith.maximumf %36, %37 : vector<10x128xf32>
    %c0_4 = arith.constant 0 : index
    %c0_5 = arith.constant 0 : index
    %39 = vector.load %arg3[%c0_4, %c0_5] : memref<10x1xf32, #tpu.memory_space<vmem>>, vector<10x1xf32>
    %40 = vector.broadcast %39 : vector<10x1xf32> to vector<10x128xf32>
    %41 = arith.mulf %38, %40 : vector<10x128xf32>
    %cst_6 = arith.constant dense<0.000000e+00> : vector<128xf32>
    %42 = vector.multi_reduction <add>, %41, %cst_6 [0] : vector<10x128xf32> to vector<128xf32>
    %43 = vector.shape_cast %42 : vector<128xf32> to vector<1x128xf32>
    %c0_7 = arith.constant 0 : index
    %c0_8 = arith.constant 0 : index
    %44 = memref.load %arg4[%c0_7, %c0_8] : memref<1x1xf32, #tpu.memory_space<smem>>
    %45 = vector.broadcast %44 : f32 to vector<1x128xf32>
    %46 = arith.addf %43, %45 : vector<1x128xf32>
    %cst_9 = arith.constant 0.000000e+00 : f32
    %47 = vector.broadcast %cst_9 : f32 to vector<1x128xf32>
    %48 = arith.subf %47, %46 : vector<1x128xf32>
    %49 = math.exp %48 : vector<1x128xf32>
    %cst_10 = arith.constant 1.000000e+00 : f32
    %50 = vector.broadcast %cst_10 : f32 to vector<1x128xf32>
    %51 = arith.addf %50, %49 : vector<1x128xf32>
    %52 = tpu.reciprocal %51 : vector<1x128xf32> -> vector<1x128xf32>
    %cst_11 = arith.constant 5.000000e+00 : f32
    %53 = vector.broadcast %cst_11 : f32 to vector<1x128xf32>
    %54 = arith.mulf %52, %53 : vector<1x128xf32>
    %cst_12 = arith.constant 5.000000e-01 : f32
    %55 = vector.broadcast %cst_12 : f32 to vector<1x128xf32>
    %56 = arith.addf %54, %55 : vector<1x128xf32>
    %c0_13 = arith.constant 0 : index
    %c0_14 = arith.constant 0 : index
    %57 = vector.load %arg5[%c0_13, %c0_14] : memref<1x128xf32, #tpu.memory_space<vmem>>, vector<1x128xf32>
    tpu.vector_store %arg5[%c0_13, %c0_14], %56 {strides = array<i32>} : memref<1x128xf32, #tpu.memory_space<vmem>>, vector<1x128xf32>,
    return
  }
  func.func @transform_0(%arg0: i32) -> (i32, i32) {
    %c0_i32 = arith.constant 0 : i32
    %c0_i32_0 = arith.constant 0 : i32
    return %c0_i32, %arg0 : i32, i32
  }
  func.func @transform_1(%arg0: i32) -> (i32, i32) {
    %c0_i32 = arith.constant 0 : i32
    %c0_i32_0 = arith.constant 0 : i32
    %c0_i32_1 = arith.constant 0 : i32
    return %c0_i32, %c0_i32_0 : i32, i32
  }
  func.func @transform_2(%arg0: i32) -> (i32, i32) {
    %c0_i32 = arith.constant 0 : i32
    %c0_i32_0 = arith.constant 0 : i32
    %c0_i32_1 = arith.constant 0 : i32
    return %c0_i32, %c0_i32_0 : i32, i32
  }
  func.func @transform_3(%arg0: i32) -> (i32, i32) {
    %c0_i32 = arith.constant 0 : i32
    %c0_i32_0 = arith.constant 0 : i32
    %c0_i32_1 = arith.constant 0 : i32
    return %c0_i32, %c0_i32_0 : i32, i32
  }
  func.func @transform_4(%arg0: i32) -> (i32, i32) {
    %c0_i32 = arith.constant 0 : i32
    %c0_i32_0 = arith.constant 0 : i32
    return %c0_i32, %arg0 : i32, i32
  }
}

</mosaic_0001>

<llo_original>
// kernel: forward.1
$region0: #{forward.1}
  #allocation0 [shape = 'u32[]', space=smem, size = 0x4, offset = 0x4, fixed_abs, tag = 'smem constant byte address 0x4 - core index']
  #allocation1 [shape = 'u32[144,128]{1,0:T(1,128)}', space=vmem, size = 0x12000, scoped, tag = 'internal scratch']
  #allocation2 [shape = 'f32[1,1]{1,0:T(1,128)S(6)}', space=smem, size = 0x200, scoped, tag = 'scoped memory for forward.1']
  %s0 = inlined_call_operand.vmem [shape: s32[8,128], index: 0, kind: input, shape index: {}]
  %s1 = inlined_call_operand.vmem [shape: f32[10,128], index: 1, kind: input, shape index: {}]
  %s2 = inlined_call_operand.vmem [shape: f32[10,1], index: 2, kind: input, shape index: {}]
  %s3 = inlined_call_operand.<no memory space> [shape: f32[1,1], index: 3, kind: input, shape index: {}]
  %s4 = inlined_call_operand.vmem [shape: f32[1,128], index: 4, kind: output, shape index: {}]
  %s5 = sld [smem:[#allocation0]]
  $region26: #{forward.1} parent=0
    _
  %s7 = ssub.s32 1, %s5
  %s8 = scalar_select 0, %s7, %s5
  %9 = sst [smem:[#allocation2]] %s3
  // Predicated region
  $region2: #{forward.1} parent=0 // pred_check
    _
  $region3: #{forward.1} parent=0 // pred_check_branch
    %11 = sbr.rel (0) target = $region5
  $region4: #{forward.1} parent=0 // pred_region
    _
  $region5: #{forward.1} parent=0 // pred_fallthru
    _
  // Predicated region
  $region6: #{forward.1} parent=0 // pred_check
    _
  $region7: #{forward.1} parent=0 // pred_check_branch
    %13 = sbr.rel (0) target = $region9
  $region8: #{forward.1} parent=0 // pred_region
    _
  $region9: #{forward.1} parent=0 // pred_fallthru
    _
  // Predicated region
  $region10: #{forward.1} parent=0 // pred_check
    _
  $region11: #{forward.1} parent=0 // pred_check_branch
    %15 = sbr.rel (0) target = $region13
  $region12: #{forward.1} parent=0 // pred_region
    _
  $region13: #{forward.1} parent=0 // pred_fallthru
    _
  // Predicated region
  $region14: #{forward.1} parent=0 // pred_check
    _
  $region15: #{forward.1} parent=0 // pred_check_branch
    %17 = sbr.rel (0) target = $region17
  $region16: #{forward.1} parent=0 // pred_region
    _
  $region17: #{forward.1} parent=0 // pred_fallthru
    _
  %v18 = vld [vmem:[%s0] sm:$0xff]
  %v19 = vlaneseq
  %v20 = vshrl.u32 %v19, 7
  %v21 = vadd.s32 %v20, 8
  %v22 = vadd.s32 %v20, 16
  %v23 = vadd.s32 %v20, 24
  %v24 = vadd.s32 %v20, 32
  %v25 = vadd.s32 %v20, 40
  %v26 = vadd.s32 %v20, 48
  %v27 = vadd.s32 %v20, 56
  %v28 = vadd.s32 %v20, 64
  %v29 = vadd.s32 %v20, 72
  %v30 = vadd.s32 %v20, 80
  %v31 = vadd.s32 %v20, 88
  %v32 = vadd.s32 %v20, 96
  %v33 = vadd.s32 %v20, 104
  %v34 = vadd.s32 %v20, 112
  %v35 = vadd.s32 %v20, 120
  %v36 = vlaneseq
  %v37 = vshrl.u32 %v36, 7
  %v38 = vsub.s32 0, %v37
  %v39 = vrot.slane %v18, %v38
  %vm40 = vcmp.eq.s32.totalorder %v20, %v39
  %vm41 = vcmp.eq.s32.totalorder %v21, %v39
  %vm42 = vcmp.eq.s32.totalorder %v22, %v39
  %vm43 = vcmp.eq.s32.totalorder %v23, %v39
  %vm44 = vcmp.eq.s32.totalorder %v24, %v39
  %vm45 = vcmp.eq.s32.totalorder %v25, %v39
  %vm46 = vcmp.eq.s32.totalorder %v26, %v39
  %vm47 = vcmp.eq.s32.totalorder %v27, %v39
  %vm48 = vcmp.eq.s32.totalorder %v28, %v39
  %vm49 = vcmp.eq.s32.totalorder %v29, %v39
  %vm50 = vcmp.eq.s32.totalorder %v30, %v39
  %vm51 = vcmp.eq.s32.totalorder %v31, %v39
  %vm52 = vcmp.eq.s32.totalorder %v32, %v39
  %vm53 = vcmp.eq.s32.totalorder %v33, %v39
  %vm54 = vcmp.eq.s32.totalorder %v34, %v39
  %vm55 = vcmp.eq.s32.totalorder %v35, %v39
  %v56 = vlaneseq
  %v57 = vshrl.u32 %v56, 7
  %v58 = vsub.s32 1, %v57
  %v59 = vrot.slane %v18, %v58
  %vm60 = vcmp.eq.s32.totalorder %v20, %v59
  %vm61 = vcmp.eq.s32.totalorder %v21, %v59
  %vm62 = vcmp.eq.s32.totalorder %v22, %v59
  %vm63 = vcmp.eq.s32.totalorder %v23, %v59
  %vm64 = vcmp.eq.s32.totalorder %v24, %v59
  %vm65 = vcmp.eq.s32.totalorder %v25, %v59
  %vm66 = vcmp.eq.s32.totalorder %v26, %v59
  %vm67 = vcmp.eq.s32.totalorder %v27, %v59
  %vm68 = vcmp.eq.s32.totalorder %v28, %v59
  %vm69 = vcmp.eq.s32.totalorder %v29, %v59
  %vm70 = vcmp.eq.s32.totalorder %v30, %v59
  %vm71 = vcmp.eq.s32.totalorder %v31, %v59
  %vm72 = vcmp.eq.s32.totalorder %v32, %v59
  %vm73 = vcmp.eq.s32.totalorder %v33, %v59
  %vm74 = vcmp.eq.s32.totalorder %v34, %v59
  %vm75 = vcmp.eq.s32.totalorder %v35, %v59
  %vm76 = vmor %vm40, %vm60
  %vm77 = vmor %vm41, %vm61
  %vm78 = vmor %vm42, %vm62
  %vm79 = vmor %vm43, %vm63
  %vm80 = vmor %vm44, %vm64
  %vm81 = vmor %vm45, %vm65
  %vm82 = vmor %vm46, %vm66
  %vm83 = vmor %vm47, %vm67
  %vm84 = vmor %vm48, %vm68
  %vm85 = vmor %vm49, %vm69
  %vm86 = vmor %vm50, %vm70
  %vm87 = vmor %vm51, %vm71
  %vm88 = vmor %vm52, %vm72
  %vm89 = vmor %vm53, %vm73
  %vm90 = vmor %vm54, %vm74
  %vm91 = vmor %vm55, %vm75
  %v92 = vlaneseq
  %v93 = vshrl.u32 %v92, 7
  %v94 = vsub.s32 2, %v93
  %v95 = vrot.slane %v18, %v94
  %vm96 = vcmp.eq.s32.totalorder %v20, %v95
  %vm97 = vcmp.eq.s32.totalorder %v21, %v95
  %vm98 = vcmp.eq.s32.totalorder %v22, %v95
  %vm99 = vcmp.eq.s32.totalorder %v23, %v95
  %vm100 = vcmp.eq.s32.totalorder %v24, %v95
  %vm101 = vcmp.eq.s32.totalorder %v25, %v95
  %vm102 = vcmp.eq.s32.totalorder %v26, %v95
  %vm103 = vcmp.eq.s32.totalorder %v27, %v95
  %vm104 = vcmp.eq.s32.totalorder %v28, %v95
  %vm105 = vcmp.eq.s32.totalorder %v29, %v95
  %vm106 = vcmp.eq.s32.totalorder %v30, %v95
  %vm107 = vcmp.eq.s32.totalorder %v31, %v95
  %vm108 = vcmp.eq.s32.totalorder %v32, %v95
  %vm109 = vcmp.eq.s32.totalorder %v33, %v95
  %vm110 = vcmp.eq.s32.totalorder %v34, %v95
  %vm111 = vcmp.eq.s32.totalorder %v35, %v95
  %vm112 = vmor %vm76, %vm96
  %vm113 = vmor %vm77, %vm97
  %vm114 = vmor %vm78, %vm98
  %vm115 = vmor %vm79, %vm99
  %vm116 = vmor %vm80, %vm100
  %vm117 = vmor %vm81, %vm101
  %vm118 = vmor %vm82, %vm102
  %vm119 = vmor %vm83, %vm103
  %vm120 = vmor %vm84, %vm104
  %vm121 = vmor %vm85, %vm105
  %vm122 = vmor %vm86, %vm106
  %vm123 = vmor %vm87, %vm107
  %vm124 = vmor %vm88, %vm108
  %vm125 = vmor %vm89, %vm109
  %vm126 = vmor %vm90, %vm110
  %vm127 = vmor %vm91, %vm111
  %v128 = vlaneseq
  %v129 = vshrl.u32 %v128, 7
  %v130 = vsub.s32 3, %v129
  %v131 = vrot.slane %v18, %v130
  %vm132 = vcmp.eq.s32.totalorder %v20, %v131
  %vm133 = vcmp.eq.s32.totalorder %v21, %v131
  %vm134 = vcmp.eq.s32.totalorder %v22, %v131
  %vm135 = vcmp.eq.s32.totalorder %v23, %v131
  %vm136 = vcmp.eq.s32.totalorder %v24, %v131
  %vm137 = vcmp.eq.s32.totalorder %v25, %v131
  %vm138 = vcmp.eq.s32.totalorder %v26, %v131
  %vm139 = vcmp.eq.s32.totalorder %v27, %v131
  %vm140 = vcmp.eq.s32.totalorder %v28, %v131
  %vm141 = vcmp.eq.s32.totalorder %v29, %v131
  %vm142 = vcmp.eq.s32.totalorder %v30, %v131
  %vm143 = vcmp.eq.s32.totalorder %v31, %v131
  %vm144 = vcmp.eq.s32.totalorder %v32, %v131
  %vm145 = vcmp.eq.s32.totalorder %v33, %v131
  %vm146 = vcmp.eq.s32.totalorder %v34, %v131
  %vm147 = vcmp.eq.s32.totalorder %v35, %v131
  %vm148 = vmor %vm112, %vm132
  %vm149 = vmor %vm113, %vm133
  %vm150 = vmor %vm114, %vm134
  %vm151 = vmor %vm115, %vm135
  %vm152 = vmor %vm116, %vm136
  %vm153 = vmor %vm117, %vm137
  %vm154 = vmor %vm118, %vm138
  %vm155 = vmor %vm119, %vm139
  %vm156 = vmor %vm120, %vm140
  %vm157 = vmor %vm121, %vm141
  %vm158 = vmor %vm122, %vm142
  %vm159 = vmor %vm123, %vm143
  %vm160 = vmor %vm124, %vm144
  %vm161 = vmor %vm125, %vm145
  %vm162 = vmor %vm126, %vm146
  %vm163 = vmor %vm127, %vm147
  %v164 = vlaneseq
  %v165 = vshrl.u32 %v164, 7
  %v166 = vsub.s32 4, %v165
  %v167 = vrot.slane %v18, %v166
  %vm168 = vcmp.eq.s32.totalorder %v20, %v167
  %vm169 = vcmp.eq.s32.totalorder %v21, %v167
  %vm170 = vcmp.eq.s32.totalorder %v22, %v167
  %vm171 = vcmp.eq.s32.totalorder %v23, %v167
  %vm172 = vcmp.eq.s32.totalorder %v24, %v167
  %vm173 = vcmp.eq.s32.totalorder %v25, %v167
  %vm174 = vcmp.eq.s32.totalorder %v26, %v167
  %vm175 = vcmp.eq.s32.totalorder %v27, %v167
  %vm176 = vcmp.eq.s32.totalorder %v28, %v167
  %vm177 = vcmp.eq.s32.totalorder %v29, %v167
  %vm178 = vcmp.eq.s32.totalorder %v30, %v167
  %vm179 = vcmp.eq.s32.totalorder %v31, %v167
  %vm180 = vcmp.eq.s32.totalorder %v32, %v167
  %vm181 = vcmp.eq.s32.totalorder %v33, %v167
  %vm182 = vcmp.eq.s32.totalorder %v34, %v167
  %vm183 = vcmp.eq.s32.totalorder %v35, %v167
  %vm184 = vmor %vm148, %vm168
  %vm185 = vmor %vm149, %vm169
  %vm186 = vmor %vm150, %vm170
  %vm187 = vmor %vm151, %vm171
  %vm188 = vmor %vm152, %vm172
  %vm189 = vmor %vm153, %vm173
  %vm190 = vmor %vm154, %vm174
  %vm191 = vmor %vm155, %vm175
  %vm192 = vmor %vm156, %vm176
  %vm193 = vmor %vm157, %vm177
  %vm194 = vmor %vm158, %vm178
  %vm195 = vmor %vm159, %vm179
  %vm196 = vmor %vm160, %vm180
  %vm197 = vmor %vm161, %vm181
  %vm198 = vmor %vm162, %vm182
  %vm199 = vmor %vm163, %vm183
  %v200 = vlaneseq
  %v201 = vshrl.u32 %v200, 7
  %v202 = vsub.s32 5, %v201
  %v203 = vrot.slane %v18, %v202
  %vm204 = vcmp.eq.s32.totalorder %v20, %v203
  %vm205 = vcmp.eq.s32.totalorder %v21, %v203
  %vm206 = vcmp.eq.s32.totalorder %v22, %v203
  %vm207 = vcmp.eq.s32.totalorder %v23, %v203
  %vm208 = vcmp.eq.s32.totalorder %v24, %v203
  %vm209 = vcmp.eq.s32.totalorder %v25, %v203
  %vm210 = vcmp.eq.s32.totalorder %v26, %v203
  %vm211 = vcmp.eq.s32.totalorder %v27, %v203
  %vm212 = vcmp.eq.s32.totalorder %v28, %v203
  %vm213 = vcmp.eq.s32.totalorder %v29, %v203
  %vm214 = vcmp.eq.s32.totalorder %v30, %v203
  %vm215 = vcmp.eq.s32.totalorder %v31, %v203
  %vm216 = vcmp.eq.s32.totalorder %v32, %v203
  %vm217 = vcmp.eq.s32.totalorder %v33, %v203
  %vm218 = vcmp.eq.s32.totalorder %v34, %v203
  %vm219 = vcmp.eq.s32.totalorder %v35, %v203
  %vm220 = vmor %vm184, %vm204
  %vm221 = vmor %vm185, %vm205
  %vm222 = vmor %vm186, %vm206
  %vm223 = vmor %vm187, %vm207
  %vm224 = vmor %vm188, %vm208
  %vm225 = vmor %vm189, %vm209
  %vm226 = vmor %vm190, %vm210
  %vm227 = vmor %vm191, %vm211
  %vm228 = vmor %vm192, %vm212
  %vm229 = vmor %vm193, %vm213
  %vm230 = vmor %vm194, %vm214
  %vm231 = vmor %vm195, %vm215
  %vm232 = vmor %vm196, %vm216
  %vm233 = vmor %vm197, %vm217
  %vm234 = vmor %vm198, %vm218
  %vm235 = vmor %vm199, %vm219
  %v236 = vlaneseq
  %v237 = vshrl.u32 %v236, 7
  %v238 = vsub.s32 6, %v237
  %v239 = vrot.slane %v18, %v238
  %vm240 = vcmp.eq.s32.totalorder %v20, %v239
  %vm241 = vcmp.eq.s32.totalorder %v21, %v239
  %vm242 = vcmp.eq.s32.totalorder %v22, %v239
  %vm243 = vcmp.eq.s32.totalorder %v23, %v239
  %vm244 = vcmp.eq.s32.totalorder %v24, %v239
  %vm245 = vcmp.eq.s32.totalorder %v25, %v239
  %vm246 = vcmp.eq.s32.totalorder %v26, %v239
  %vm247 = vcmp.eq.s32.totalorder %v27, %v239
  %vm248 = vcmp.eq.s32.totalorder %v28, %v239
  %vm249 = vcmp.eq.s32.totalorder %v29, %v239
  %vm250 = vcmp.eq.s32.totalorder %v30, %v239
  %vm251 = vcmp.eq.s32.totalorder %v31, %v239
  %vm252 = vcmp.eq.s32.totalorder %v32, %v239
  %vm253 = vcmp.eq.s32.totalorder %v33, %v239
  %vm254 = vcmp.eq.s32.totalorder %v34, %v239
  %vm255 = vcmp.eq.s32.totalorder %v35, %v239
  %vm256 = vmor %vm220, %vm240
  %vm257 = vmor %vm221, %vm241
  %vm258 = vmor %vm222, %vm242
  %vm259 = vmor %vm223, %vm243
  %vm260 = vmor %vm224, %vm244
  %vm261 = vmor %vm225, %vm245
  %vm262 = vmor %vm226, %vm246
  %vm263 = vmor %vm227, %vm247
  %vm264 = vmor %vm228, %vm248
  %vm265 = vmor %vm229, %vm249
  %vm266 = vmor %vm230, %vm250
  %vm267 = vmor %vm231, %vm251
  %vm268 = vmor %vm232, %vm252
  %vm269 = vmor %vm233, %vm253
  %vm270 = vmor %vm234, %vm254
  %vm271 = vmor %vm235, %vm255
  %v272 = vlaneseq
  %v273 = vshrl.u32 %v272, 7
  %v274 = vsub.s32 7, %v273
  %v275 = vrot.slane %v18, %v274
  %vm276 = vcmp.eq.s32.totalorder %v20, %v275
  %vm277 = vcmp.eq.s32.totalorder %v21, %v275
  %vm278 = vcmp.eq.s32.totalorder %v22, %v275
  %vm279 = vcmp.eq.s32.totalorder %v23, %v275
  %vm280 = vcmp.eq.s32.totalorder %v24, %v275
  %vm281 = vcmp.eq.s32.totalorder %v25, %v275
  %vm282 = vcmp.eq.s32.totalorder %v26, %v275
  %vm283 = vcmp.eq.s32.totalorder %v27, %v275
  %vm284 = vcmp.eq.s32.totalorder %v28, %v275
  %vm285 = vcmp.eq.s32.totalorder %v29, %v275
  %vm286 = vcmp.eq.s32.totalorder %v30, %v275
  %vm287 = vcmp.eq.s32.totalorder %v31, %v275
  %vm288 = vcmp.eq.s32.totalorder %v32, %v275
  %vm289 = vcmp.eq.s32.totalorder %v33, %v275
  %vm290 = vcmp.eq.s32.totalorder %v34, %v275
  %vm291 = vcmp.eq.s32.totalorder %v35, %v275
  %vm292 = vmor %vm256, %vm276
  %vm293 = vmor %vm257, %vm277
  %vm294 = vmor %vm258, %vm278
  %vm295 = vmor %vm259, %vm279
  %vm296 = vmor %vm260, %vm280
  %vm297 = vmor %vm261, %vm281
  %vm298 = vmor %vm262, %vm282
  %vm299 = vmor %vm263, %vm283
  %vm300 = vmor %vm264, %vm284
  %vm301 = vmor %vm265, %vm285
  %vm302 = vmor %vm266, %vm286
  %vm303 = vmor %vm267, %vm287
  %vm304 = vmor %vm268, %vm288
  %vm305 = vmor %vm269, %vm289
  %vm306 = vmor %vm270, %vm290
  %vm307 = vmor %vm271, %vm291
  %v308 = vsel %vm292, 1, 0
  %v309 = vsel %vm293, 1, 0
  %v310 = vsel %vm294, 1, 0
  %v311 = vsel %vm295, 1, 0
  %v312 = vsel %vm296, 1, 0
  %v313 = vsel %vm297, 1, 0
  %v314 = vsel %vm298, 1, 0
  %v315 = vsel %vm299, 1, 0
  %v316 = vsel %vm300, 1, 0
  %v317 = vsel %vm301, 1, 0
  %v318 = vsel %vm302, 1, 0
  %v319 = vsel %vm303, 1, 0
  %v320 = vsel %vm304, 1, 0
  %v321 = vsel %vm305, 1, 0
  %v322 = vsel %vm306, 1, 0
  %v323 = vsel %vm307, 1, 0
  %v324 = vcvt.s32.f32 %v308
  %v325 = vcvt.s32.f32 %v309
  %v326 = vcvt.s32.f32 %v310
  %v327 = vcvt.s32.f32 %v311
  %v328 = vcvt.s32.f32 %v312
  %v329 = vcvt.s32.f32 %v313
  %v330 = vcvt.s32.f32 %v314
  %v331 = vcvt.s32.f32 %v315
  %v332 = vcvt.s32.f32 %v316
  %v333 = vcvt.s32.f32 %v317
  %v334 = vcvt.s32.f32 %v318
  %v335 = vcvt.s32.f32 %v319
  %v336 = vcvt.s32.f32 %v320
  %v337 = vcvt.s32.f32 %v321
  %v338 = vcvt.s32.f32 %v322
  %v339 = vcvt.s32.f32 %v323
  %v340 = vld [vmem:[%s1] sm:$0xff]
  %v341 = vld [vmem:[%s1 + $0x8] sm:$0x3]
  %342 = vmatprep.subr.mxu0 0.0
  %343 = vmatpush1.msra.mxu0 %v324
  %344 = vmatprep.subr.mxu0 0.0
  %345 = vmatpush1.msra.mxu0 %v325
  %346 = vmatprep.subr.mxu0 0.0
  %347 = vmatpush1.msra.mxu0 %v326
  %348 = vmatprep.subr.mxu0 0.0
  %349 = vmatpush1.msra.mxu0 %v327
  %350 = vmatprep.subr.mxu0 0.0
  %351 = vmatpush1.msra.mxu0 %v328
  %352 = vmatprep.subr.mxu0 0.0
  %353 = vmatpush1.msra.mxu0 %v329
  %354 = vmatprep.subr.mxu0 0.0
  %355 = vmatpush1.msra.mxu0 %v330
  %356 = vmatprep.subr.mxu0 0.0
  %357 = vmatpush1.msra.mxu0 %v331
  %358 = vmatprep.subr.mxu0 0.0
  %359 = vmatpush1.msra.mxu0 %v332
  %360 = vmatprep.subr.mxu0 0.0
  %361 = vmatpush1.msra.mxu0 %v333
  %362 = vmatprep.subr.mxu0 0.0
  %363 = vmatpush1.msra.mxu0 %v334
  %364 = vmatprep.subr.mxu0 0.0
  %365 = vmatpush1.msra.mxu0 %v335
  %366 = vmatprep.subr.mxu0 0.0
  %367 = vmatpush1.msra.mxu0 %v336
  %368 = vmatprep.subr.mxu0 0.0
  %369 = vmatpush1.msra.mxu0 %v337
  %370 = vmatprep.subr.mxu0 0.0
  %371 = vmatpush1.msra.mxu0 %v338
  %372 = vmatprep.subr.mxu0 0.0
  %373 = vmatpush1.msra.mxu0 %v339
  %374 = vmatprep.subr.mxu0 0.0
  %375 = vmatpush1.msra.mxu0 0.0
  %376 = vmatprep.subr.mxu0 0.0
  %377 = vmatpush1.msra.mxu0 0.0
  %378 = vmatprep.subr.mxu0 0.0
  %379 = vmatpush1.msra.mxu0 0.0
  %380 = vmatprep.subr.mxu0 0.0
  %381 = vmatpush1.msra.mxu0 0.0
  %382 = vmatprep.subr.mxu0 0.0
  %383 = vmatpush1.msra.mxu0 0.0
  %384 = vmatprep.subr.mxu0 0.0
  %385 = vmatpush1.msra.mxu0 0.0
  %386 = vmatprep.subr.mxu0 0.0
  %387 = vmatpush1.msra.mxu0 0.0
  %388 = vmatprep.subr.mxu0 0.0
  %389 = vmatpush1.msra.mxu0 0.0
  %390 = vmatprep.subr.mxu0 0.0
  %391 = vmatpush1.msra.mxu0 0.0
  %392 = vmatprep.subr.mxu0 0.0
  %393 = vmatpush1.msra.mxu0 0.0
  %394 = vmatprep.subr.mxu0 0.0
  %395 = vmatpush1.msra.mxu0 0.0
  %396 = vmatprep.subr.mxu0 0.0
  %397 = vmatpush1.msra.mxu0 0.0
  %398 = vmatprep.subr.mxu0 0.0
  %399 = vmatpush1.msra.mxu0 0.0
  %400 = vmatprep.subr.mxu0 0.0
  %401 = vmatpush1.msra.mxu0 0.0
  %402 = vmatprep.subr.mxu0 0.0
  %403 = vmatpush1.msra.mxu0 0.0
  %404 = vmatprep.subr.mxu0 0.0
  %405 = vmatpush1.msra.mxu0 0.0
  %406 = vmatprep.mubr.f32.mxu0 0.0
  %407 = vmatmul.mubr.f32.gmra.mrb[0].mxu0 %v340
  %v408 = vpop.f32.mrb[0].mxu0
  %v409 = vadd.f32 0.0, %v408
  %v410 = vpop.f32.mrb[0].mxu0
  %411 = vmatprep.mubr.f32.mxu0 0.0
  %412 = vmatmul.mubr.f32.gmra.mrb[0].mxu0 %v341
  %v413 = vpop.f32.mrb[0].mxu0
  %v414 = vadd.f32 0.0, %v413
  %v415 = vpop.f32.mrb[0].mxu0
  %416 = vdwg.mxu0
  %v417 = vmax.f32 %v409, 0.0
  %v418 = vmax.f32 %v414, 0.0
  %v419 = vld [vmem:[%s2] sm:$0xff]
  %v420 = vld [vmem:[%s2 + $0x8] sm:$0x3]
  %422 = vset.pattern.permute.xlu0 0
  %423 = vperm.xlu0 %422, %v419
  %v424 = vpop.permute.xlu0 %423
  %427 = vset.pattern.permute.xlu0 0
  %428 = vperm.xlu0 %427, %v420
  %v429 = vpop.permute.xlu0 %428
  %v431 = vmul.f32 %v417, %v424
  %v432 = vmul.f32 %v418, %v429
  %vm433 = vcmask 1041408
  %v434 = vsel %vm433, %v432, 0.0
  %v435 = vadd.f32 %v431, %v434
  %v436 = vrot.slane %v435, 4
  %v437 = vadd.f32 %v435, %v436
  %v438 = vrot.slane %v437, 2
  %v439 = vadd.f32 %v437, %v438
  %v440 = vrot.slane %v439, 1
  %v441 = vadd.f32 %v439, %v440
  %s442 = sld [smem:[#allocation2]]
  %v443 = vstv %s442
  %v444 = vadd.f32 %v441, %v443
  %v445 = vsub.f32 0.0, %v444
  %v446 = vmul.f32 %v445, 1.442695
  %v447 = vpow.pop %v446
  %v448 = vadd.f32 %v447, 1.0
  %v449 = vrcp.pop %v448
  %v450 = vmul.f32 %v449, 5.0
  %v451 = vadd.f32 %v450, 0.5
  %452 = vst [vmem:[%s4] sm:$0x1] %v451
  // Predicated region
  $region18: #{forward.1} parent=0 // pred_check
    _
  $region19: #{forward.1} parent=0 // pred_check_branch
    %454 = sbr.rel (0) target = $region21
  $region20: #{forward.1} parent=0 // pred_region
    _
  $region21: #{forward.1} parent=0 // pred_fallthru
    _
  // Predicated region
  $region22: #{forward.1} parent=0 // pred_check
    _
  $region23: #{forward.1} parent=0 // pred_check_branch
    %456 = sbr.rel (0) target = $region25
  $region24: #{forward.1} parent=0 // pred_region
    _
  $region25: #{forward.1} parent=0 // pred_fallthru
    _

</llo_original>
